<compile_context>
chip_gen: v7x
topology: tpu7x:2x2x1
jax: 0.10.0
libtpu: 0.0.40
codegen_flags: <defaults>
</compile_context>

<pallas_src>
import functools

import jax
import jax.numpy as jnp
from jax.experimental import pallas as pl
from jax.experimental.pallas import tpu as pltpu

# ---- problem size (len(neuid) in the original script) ------------------------
N_NUMNEU = 32
N_OUT = 2

# ---- lane-dense folding / tiling parameters ----------------------------------
FOLD = 64                        # 64 batch rows -> 1 folded row; out width = 128 lanes
FOLD_IN = N_NUMNEU * FOLD        # 2048 (divisible by 128)
FOLD_OUT = N_OUT * FOLD          # 128  (exactly one lane row -> unmasked stores)
MAX_TB = 1024                    # folded rows per grid step (1024*2048*4B = 8 MiB x tile)
VMEM_LIMIT_BYTES = 48 * 1024 * 1024


def _cdiv(a: int, b: int) -> int:
    return (a + b - 1) // b


def _round_up(a: int, b: int) -> int:
    return _cdiv(a, b) * b


def _linear_kernel(x_ref, wt_ref, b_ref, o_ref):
    # x_ref:  [TB, FOLD_IN]        activations (native dtype; cast on-tile)
    # wt_ref: [FOLD_IN, FOLD_OUT]  block-diagonal weight (FOLD copies of W.T), matmul dtype
    # b_ref:  [1, FOLD_OUT]        bias tiled FOLD times (f32)
    # o_ref:  [TB, FOLD_OUT]       f32 output
    x = x_ref[...].astype(wt_ref.dtype)
    acc = jnp.dot(x, wt_ref[...], preferred_element_type=jnp.float32)
    o_ref[...] = (acc + b_ref[...].astype(jnp.float32)).astype(o_ref.dtype)


def fold_params(weight, bias, matmul_dtype=jnp.bfloat16):
    """Build folded (block-diagonal) parameters ONCE, outside the forward path.

    weight: [2, N_NUMNEU] (PyTorch Linear layout: [out, in]),  bias: [2]
    returns wt_bd [FOLD_IN, FOLD_OUT] in matmul_dtype, b_fold [1, FOLD_OUT] f32.
    """
    wt_bd = jnp.kron(jnp.eye(FOLD, dtype=weight.dtype), weight.T).astype(matmul_dtype)
    b_fold = jnp.tile(bias.astype(jnp.float32), FOLD).reshape(1, FOLD_OUT)
    return wt_bd, b_fold


@jax.jit
def classifier_apply(x, wt_bd, b_fold):
    """out = x.view(B, -1) @ W.T + b, using pre-folded parameters."""
    B = x.shape[0]
    x2d = x.reshape(B, -1)                       # x.view(x.shape[0], -1); native dtype kept
    assert x2d.shape[1] == N_NUMNEU, "flattened feature dim must equal n_numneu"

    # Pad only up to a multiple of FOLD (< 64 rows); no padding at all when B % 64 == 0.
    rem = B % FOLD
    if rem:
        x2d = jnp.pad(x2d, ((0, FOLD - rem), (0, 0)))
    rows = x2d.shape[0] // FOLD
    xf = x2d.reshape(rows, FOLD_IN)              # free bitcast reshape when no pad needed

    # Tile height: sublane-aligned, capped, and split >=2 ways so both v7x TCs get work.
    TB = min(MAX_TB, max(8, _round_up(_cdiv(rows, 2), 8)))
    grid = (_cdiv(rows, TB),)                    # ragged last block handled by Pallas

    cost = pl.CostEstimate(
        flops=2 * rows * FOLD_IN * FOLD_OUT,     # folded MAC count
        transcendentals=0,
        bytes_accessed=(xf.size * xf.dtype.itemsize
                        + wt_bd.size * wt_bd.dtype.itemsize
                        + b_fold.size * b_fold.dtype.itemsize
                        + rows * FOLD_OUT * 4),
    )

    out_folded = pl.pallas_call(
        _linear_kernel,
        out_shape=jax.ShapeDtypeStruct((rows, FOLD_OUT), jnp.float32),
        grid=grid,
        in_specs=[
            pl.BlockSpec((TB, FOLD_IN), lambda i: (i, 0)),        # x: row-tiled, pipelined
            pl.BlockSpec((FOLD_IN, FOLD_OUT), lambda i: (0, 0)),  # weight: VMEM-resident
            pl.BlockSpec((1, FOLD_OUT), lambda i: (0, 0)),        # bias:   VMEM-resident
        ],
        out_specs=pl.BlockSpec((TB, FOLD_OUT), lambda i: (i, 0)),
        compiler_params=pltpu.CompilerParams(
            dimension_semantics=("parallel",),        # shard row tiles across TCs (v7x)
            vmem_limit_bytes=VMEM_LIMIT_BYTES,
        ),
        cost_estimate=cost,
    )(xf, wt_bd, b_fold)

    # Un-fold back to [B, 2] and drop the (<64) pad rows.
    return out_folded.reshape(rows * FOLD, N_OUT)[:B]


def classifier_forward(x, weight, bias, matmul_dtype=jnp.bfloat16):
    """Convenience one-shot API (folds params then applies)."""
    wt_bd, b_fold = fold_params(weight, bias, matmul_dtype)
    return classifier_apply(x, wt_bd, b_fold)


def init_params(key):
    """Deterministic init matching nn.Linear(n_numneu, 2) shapes
    (uniform in +/- 1/sqrt(fan_in), like PyTorch's default)."""
    kw, kb = jax.random.split(key)
    bound = 1.0 / jnp.sqrt(jnp.float32(N_NUMNEU))
    weight = jax.random.uniform(kw, (N_OUT, N_NUMNEU), jnp.float32, -bound, bound)
    bias = jax.random.uniform(kb, (N_OUT,), jnp.float32, -bound, bound)
    return weight, bias


if __name__ == "__main__":
    key = jax.random.PRNGKey(0)
    k_x, k_p, k_x2, k_x3 = jax.random.split(key, 4)

    weight, bias = init_params(k_p)

    # Fold parameters once (hoisted out of the forward path).
    wt_bd_bf16, b_fold = fold_params(weight, bias, jnp.bfloat16)
    wt_bd_f32, _ = fold_params(weight, bias, jnp.float32)

    # 1) Small batch, input shaped [2, 4, 8] -> flattened to 32 = n_numneu (bf16 matmul).
    x = jax.random.normal(k_x, (2, 4, 8), jnp.float32)
    out = classifier_apply(x, wt_bd_bf16, b_fold)
    jax.block_until_ready(out)
    ref = x.reshape(2, -1) @ weight.T + bias
    assert out.shape == (2, 2)
    assert jnp.allclose(out, ref, atol=2e-2, rtol=2e-2)

    # 2) Batch not a multiple of FOLD (tail-pad + ragged-grid path).
    x2 = jax.random.normal(k_x2, (100, N_NUMNEU), jnp.float32)
    out2 = classifier_apply(x2, wt_bd_bf16, b_fold)
    jax.block_until_ready(out2)
    ref2 = x2 @ weight.T + bias
    assert out2.shape == (100, 2)
    assert jnp.allclose(out2, ref2, atol=2e-2, rtol=2e-2)

    # 3) Batch that folds exactly (no padding, free reshape), full-precision f32 path.
    x3 = jax.random.normal(k_x3, (2 * FOLD, N_NUMNEU), jnp.float32)
    out3 = classifier_apply(x3, wt_bd_f32, b_fold)
    jax.block_until_ready(out3)
    ref3 = x3 @ weight.T + bias
    assert out3.shape == (2 * FOLD, 2)
    assert jnp.allclose(out3, ref3, atol=1e-5, rtol=1e-5)

    print("KERNEL_OK")
</pallas_src>

<mosaic_0001>
module attributes {stable_mosaic.version = 11 : i64} {
  func.func @_linear_kernel(%arg0: i32, %arg1: memref<8x2048xf32, #tpu.memory_space<vmem>>, %arg2: memref<2048x128xbf16, #tpu.memory_space<vmem>>, %arg3: memref<1x128xf32, #tpu.memory_space<vmem>>, %arg4: memref<8x128xf32, #tpu.memory_space<vmem>>) attributes {dimension_semantics = [#tpu.dimension_semantics<parallel>], iteration_bounds = array<i64: 1>, scalar_prefetch = 0 : i64, scratch_operands = 0 : i64, tpu.core_type = #tpu.core_type<tc>, window_params = [{transform_indices = @transform_0, window_bounds = array<i64: 8, 2048>}, {pipeline_mode = #tpu.pipeline_mode<synchronous>, transform_indices = @transform_1, window_bounds = array<i64: 2048, 128>}, {pipeline_mode = #tpu.pipeline_mode<synchronous>, transform_indices = @transform_2, window_bounds = array<i64: 1, 128>}, {transform_indices = @transform_3, window_bounds = array<i64: 8, 128>}]} {
    %c0 = arith.constant 0 : index
    %c0_0 = arith.constant 0 : index
    %0 = vector.load %arg1[%c0, %c0_0] : memref<8x2048xf32, #tpu.memory_space<vmem>>, vector<8x2048xf32>
    %1 = arith.truncf %0 : vector<8x2048xf32> to vector<8x2048xbf16>
    %c0_1 = arith.constant 0 : index
    %c0_2 = arith.constant 0 : index
    %2 = vector.load %arg2[%c0_1, %c0_2] : memref<2048x128xbf16, #tpu.memory_space<vmem>>, vector<2048x128xbf16>
    %cst = arith.constant dense<0.000000e+00> : vector<8x128xf32>
    %3 = tpu.matmul %1, %2, %cst {dimension_numbers = #tpu.dot_dimension_numbers<[1], [0], [0], [1], [0, 0, 1, 1], [], []>} : vector<8x2048xbf16>, vector<2048x128xbf16>, vector<8x128xf32> -> vector<8x128xf32>
    %c0_3 = arith.constant 0 : index
    %c0_4 = arith.constant 0 : index
    %4 = vector.load %arg3[%c0_3, %c0_4] : memref<1x128xf32, #tpu.memory_space<vmem>>, vector<1x128xf32>
    %5 = vector.broadcast %4 : vector<1x128xf32> to vector<8x128xf32>
    %6 = arith.addf %3, %5 : vector<8x128xf32>
    %c0_5 = arith.constant 0 : index
    %c0_6 = arith.constant 0 : index
    %7 = vector.load %arg4[%c0_5, %c0_6] : memref<8x128xf32, #tpu.memory_space<vmem>>, vector<8x128xf32>
    tpu.vector_store %arg4[%c0_5, %c0_6], %6 {strides = array<i32>} : memref<8x128xf32, #tpu.memory_space<vmem>>, vector<8x128xf32>,
    return
  }
  func.func @transform_0(%arg0: i32) -> (i32, i32) {
    %c0_i32 = arith.constant 0 : i32
    %c0_i32_0 = arith.constant 0 : i32
    return %arg0, %c0_i32 : i32, i32
  }
  func.func @transform_1(%arg0: i32) -> (i32, i32) {
    %c0_i32 = arith.constant 0 : i32
    %c0_i32_0 = arith.constant 0 : i32
    %c0_i32_1 = arith.constant 0 : i32
    return %c0_i32, %c0_i32_0 : i32, i32
  }
  func.func @transform_2(%arg0: i32) -> (i32, i32) {
    %c0_i32 = arith.constant 0 : i32
    %c0_i32_0 = arith.constant 0 : i32
    %c0_i32_1 = arith.constant 0 : i32
    return %c0_i32, %c0_i32_0 : i32, i32
  }
  func.func @transform_3(%arg0: i32) -> (i32, i32) {
    %c0_i32 = arith.constant 0 : i32
    %c0_i32_0 = arith.constant 0 : i32
    return %arg0, %c0_i32 : i32, i32
  }
}

</mosaic_0001>

<llo_original>
// kernel: classifier_apply.1
$region0: #{classifier_apply.1}
  #allocation0 [shape = 'u32[]', space=smem, size = 0x4, offset = 0x4, fixed_abs, tag = 'smem constant byte address 0x4 - core index']
  #allocation1 [shape = 'u32[144,128]{1,0:T(1,128)}', space=vmem, size = 0x12000, scoped, tag = 'internal scratch']
  %s0 = inlined_call_operand.vmem [shape: f32[1,2048], index: 0, kind: input, shape index: {}]
  %s1 = inlined_call_operand.hbm [shape: bf16[2048,128], index: 1, kind: input, shape index: {}]
  %s2 = inlined_call_operand.vmem [shape: f32[1,128], index: 2, kind: input, shape index: {}]
  %s3 = inlined_call_operand.vmem [shape: f32[1,128], index: 3, kind: output, shape index: {}]
  %s4 = sld [smem:[#allocation0]]
  $region56: #{classifier_apply.1} parent=0
    _
  %s6 = ssub.s32 1, %s4
  %s7 = scalar_select 0, %s6, %s4
  $region1: #{classifier_apply.1} parent=0
    #allocation2 [shape = 'u8[524288]{0}', space=vmem, size = 0x80000, scoped, tag = 'input window, operand 1, single buffered']
    #allocation3 [shape = 's32[1]{0}', space=sflag, size = 0x4, scoped, tag = 'scoped memory for classifier_apply.1']
    #allocation4 [shape = 'u8[4096]{0}', space=vmem, size = 0x1000, scoped, tag = 'output window, operand 0, single buffered']
    %8 = vsyncpa [#allocation3], 0
    // Predicated region
    $region2: #{classifier_apply.1} parent=1 // pred_check
      _
    $region3: #{classifier_apply.1} parent=1 // pred_check_branch
      %10 = sbr.rel (0) target = $region5
    $region4: #{classifier_apply.1} parent=1 // pred_region
      _
    $region5: #{classifier_apply.1} parent=1 // pred_fallthru
      _
    // Predicated region
    $region6: #{classifier_apply.1} parent=1 // pred_check
      _
    $region7: #{classifier_apply.1} parent=1 // pred_check_branch
      %12 = sbr.rel (0) target = $region9
    $region8: #{classifier_apply.1} parent=1 // pred_region
      %s14 = ssub.s32 16384, 16384
      %15 = vsyncadd [#allocation3], %s14
      %s16 = sshll.u32 [#allocation2], 4
      %s17 = int_to_ptr.vmem [resolvable:$true] %s16
      %22 = dma.hbm_to_vmem [thread:$0]  %s1, 16384, %s17, [#allocation3], 64, 64, 4
    $region9: #{classifier_apply.1} parent=1 // pred_fallthru
      _
    // Predicated region
    $region10: #{classifier_apply.1} parent=1 // pred_check
      _
    $region11: #{classifier_apply.1} parent=1 // pred_check_branch
      %24 = sbr.rel (0) target = $region13
    $region12: #{classifier_apply.1} parent=1 // pred_region
      _
    $region13: #{classifier_apply.1} parent=1 // pred_fallthru
      _
    // Predicated region
    $region14: #{classifier_apply.1} parent=1 // pred_check
      _
    $region15: #{classifier_apply.1} parent=1 // pred_check_branch
      %26 = sbr.rel (0) target = $region17
    $region16: #{classifier_apply.1} parent=1 // pred_region
      %27 = dma.done [#allocation3], 16384
    $region17: #{classifier_apply.1} parent=1 // pred_fallthru
      _
    %v29 = vld [vmem:[%s0] sm:$0xff]
    %v30 = vld [vmem:[%s0 + $0x8] sm:$0xff]
    %v31 = vld [vmem:[%s0 + $0x10] sm:$0xff]
    %v32 = vld [vmem:[%s0 + $0x18] sm:$0xff]
    %v33 = vld [vmem:[%s0 + $0x20] sm:$0xff]
    %v34 = vld [vmem:[%s0 + $0x28] sm:$0xff]
    %v35 = vld [vmem:[%s0 + $0x30] sm:$0xff]
    %v36 = vld [vmem:[%s0 + $0x38] sm:$0xff]
    %v37 = vld [vmem:[%s0 + $0x40] sm:$0xff]
    %v38 = vld [vmem:[%s0 + $0x48] sm:$0xff]
    %v39 = vld [vmem:[%s0 + $0x50] sm:$0xff]
    %v40 = vld [vmem:[%s0 + $0x58] sm:$0xff]
    %v41 = vld [vmem:[%s0 + $0x60] sm:$0xff]
    %v42 = vld [vmem:[%s0 + $0x68] sm:$0xff]
    %v43 = vld [vmem:[%s0 + $0x70] sm:$0xff]
    %v44 = vld [vmem:[%s0 + $0x78] sm:$0xff]
    %v61 = vcombine.low %v29, %v31
    %v62 = vcombine.high %v29, %v31
    %v63 = vcombine.low %v33, %v35
    %v64 = vcombine.high %v33, %v35
    %v65 = vcombine.low %v37, %v39
    %v66 = vcombine.high %v37, %v39
    %v67 = vcombine.low %v41, %v43
    %v68 = vcombine.high %v41, %v43
    %v70 = vunpack.c.l.s4 1966171168
    %v71 = vunpack.c.0.s8 %v70
    %v72 = vlaneseq
    %v73 = vshrl.u32 %v72, 7
    %v74 = vsub.s32 %v71, %v73
    %v75 = vrot.slane %v61, %v74
    %v77 = vunpack.c.l.s4 1966171168
    %v78 = vunpack.c.0.s8 %v77
    %v79 = vlaneseq
    %v80 = vshrl.u32 %v79, 7
    %v81 = vsub.s32 %v78, %v80
    %v82 = vrot.slane %v62, %v81
    %v84 = vunpack.c.l.s4 1966171168
    %v85 = vunpack.c.0.s8 %v84
    %v86 = vlaneseq
    %v87 = vshrl.u32 %v86, 7
    %v88 = vsub.s32 %v85, %v87
    %v89 = vrot.slane %v63, %v88
    %v91 = vunpack.c.l.s4 1966171168
    %v92 = vunpack.c.0.s8 %v91
    %v93 = vlaneseq
    %v94 = vshrl.u32 %v93, 7
    %v95 = vsub.s32 %v92, %v94
    %v96 = vrot.slane %v64, %v95
    %v98 = vunpack.c.l.s4 1966171168
    %v99 = vunpack.c.0.s8 %v98
    %v100 = vlaneseq
    %v101 = vshrl.u32 %v100, 7
    %v102 = vsub.s32 %v99, %v101
    %v103 = vrot.slane %v65, %v102
    %v105 = vunpack.c.l.s4 1966171168
    %v106 = vunpack.c.0.s8 %v105
    %v107 = vlaneseq
    %v108 = vshrl.u32 %v107, 7
    %v109 = vsub.s32 %v106, %v108
    %v110 = vrot.slane %v66, %v109
    %v112 = vunpack.c.l.s4 1966171168
    %v113 = vunpack.c.0.s8 %v112
    %v114 = vlaneseq
    %v115 = vshrl.u32 %v114, 7
    %v116 = vsub.s32 %v113, %v115
    %v117 = vrot.slane %v67, %v116
    %v119 = vunpack.c.l.s4 1966171168
    %v120 = vunpack.c.0.s8 %v119
    %v121 = vlaneseq
    %v122 = vshrl.u32 %v121, 7
    %v123 = vsub.s32 %v120, %v122
    %v124 = vrot.slane %v68, %v123
    %v125 = vcombine.low %v75, %v89
    %v126 = vcombine.high %v75, %v89
    %v127 = vcombine.low %v82, %v96
    %v128 = vcombine.high %v82, %v96
    %v129 = vcombine.low %v103, %v117
    %v130 = vcombine.high %v103, %v117
    %v131 = vcombine.low %v110, %v124
    %v132 = vcombine.high %v110, %v124
    %v134 = vunpack.c.l.s4 1966171168
    %v135 = vunpack.c.0.s8 %v134
    %v136 = vlaneseq
    %v137 = vshrl.u32 %v136, 7
    %v138 = vsub.s32 %v135, %v137
    %v139 = vrot.slane %v125, %v138
    %v141 = vunpack.c.l.s4 1966171168
    %v142 = vunpack.c.0.s8 %v141
    %v143 = vlaneseq
    %v144 = vshrl.u32 %v143, 7
    %v145 = vsub.s32 %v142, %v144
    %v146 = vrot.slane %v127, %v145
    %v148 = vunpack.c.l.s4 1966171168
    %v149 = vunpack.c.0.s8 %v148
    %v150 = vlaneseq
    %v151 = vshrl.u32 %v150, 7
    %v152 = vsub.s32 %v149, %v151
    %v153 = vrot.slane %v126, %v152
    %v155 = vunpack.c.l.s4 1966171168
    %v156 = vunpack.c.0.s8 %v155
    %v157 = vlaneseq
    %v158 = vshrl.u32 %v157, 7
    %v159 = vsub.s32 %v156, %v158
    %v160 = vrot.slane %v128, %v159
    %v162 = vunpack.c.l.s4 1966171168
    %v163 = vunpack.c.0.s8 %v162
    %v164 = vlaneseq
    %v165 = vshrl.u32 %v164, 7
    %v166 = vsub.s32 %v163, %v165
    %v167 = vrot.slane %v129, %v166
    %v169 = vunpack.c.l.s4 1966171168
    %v170 = vunpack.c.0.s8 %v169
    %v171 = vlaneseq
    %v172 = vshrl.u32 %v171, 7
    %v173 = vsub.s32 %v170, %v172
    %v174 = vrot.slane %v131, %v173
    %v176 = vunpack.c.l.s4 1966171168
    %v177 = vunpack.c.0.s8 %v176
    %v178 = vlaneseq
    %v179 = vshrl.u32 %v178, 7
    %v180 = vsub.s32 %v177, %v179
    %v181 = vrot.slane %v130, %v180
    %v183 = vunpack.c.l.s4 1966171168
    %v184 = vunpack.c.0.s8 %v183
    %v185 = vlaneseq
    %v186 = vshrl.u32 %v185, 7
    %v187 = vsub.s32 %v184, %v186
    %v188 = vrot.slane %v132, %v187
    %v189 = vcombine.low %v139, %v167
    %v190 = vcombine.high %v139, %v167
    %v191 = vcombine.low %v146, %v174
    %v192 = vcombine.high %v146, %v174
    %v193 = vcombine.low %v153, %v181
    %v194 = vcombine.high %v153, %v181
    %v195 = vcombine.low %v160, %v188
    %v196 = vcombine.high %v160, %v188
    %v197 = vcombine.low %v30, %v32
    %v198 = vcombine.high %v30, %v32
    %v199 = vcombine.low %v34, %v36
    %v200 = vcombine.high %v34, %v36
    %v201 = vcombine.low %v38, %v40
    %v202 = vcombine.high %v38, %v40
    %v203 = vcombine.low %v42, %v44
    %v204 = vcombine.high %v42, %v44
    %v206 = vunpack.c.l.s4 1966171168
    %v207 = vunpack.c.0.s8 %v206
    %v208 = vlaneseq
    %v209 = vshrl.u32 %v208, 7
    %v210 = vsub.s32 %v207, %v209
    %v211 = vrot.slane %v197, %v210
    %v213 = vunpack.c.l.s4 1966171168
    %v214 = vunpack.c.0.s8 %v213
    %v215 = vlaneseq
    %v216 = vshrl.u32 %v215, 7
    %v217 = vsub.s32 %v214, %v216
    %v218 = vrot.slane %v198, %v217
    %v220 = vunpack.c.l.s4 1966171168
    %v221 = vunpack.c.0.s8 %v220
    %v222 = vlaneseq
    %v223 = vshrl.u32 %v222, 7
    %v224 = vsub.s32 %v221, %v223
    %v225 = vrot.slane %v199, %v224
    %v227 = vunpack.c.l.s4 1966171168
    %v228 = vunpack.c.0.s8 %v227
    %v229 = vlaneseq
    %v230 = vshrl.u32 %v229, 7
    %v231 = vsub.s32 %v228, %v230
    %v232 = vrot.slane %v200, %v231
    %v234 = vunpack.c.l.s4 1966171168
    %v235 = vunpack.c.0.s8 %v234
    %v236 = vlaneseq
    %v237 = vshrl.u32 %v236, 7
    %v238 = vsub.s32 %v235, %v237
    %v239 = vrot.slane %v201, %v238
    %v241 = vunpack.c.l.s4 1966171168
    %v242 = vunpack.c.0.s8 %v241
    %v243 = vlaneseq
    %v244 = vshrl.u32 %v243, 7
    %v245 = vsub.s32 %v242, %v244
    %v246 = vrot.slane %v202, %v245
    %v248 = vunpack.c.l.s4 1966171168
    %v249 = vunpack.c.0.s8 %v248
    %v250 = vlaneseq
    %v251 = vshrl.u32 %v250, 7
    %v252 = vsub.s32 %v249, %v251
    %v253 = vrot.slane %v203, %v252
    %v255 = vunpack.c.l.s4 1966171168
    %v256 = vunpack.c.0.s8 %v255
    %v257 = vlaneseq
    %v258 = vshrl.u32 %v257, 7
    %v259 = vsub.s32 %v256, %v258
    %v260 = vrot.slane %v204, %v259
    %v261 = vcombine.low %v211, %v225
    %v262 = vcombine.high %v211, %v225
    %v263 = vcombine.low %v218, %v232
    %v264 = vcombine.high %v218, %v232
    %v265 = vcombine.low %v239, %v253
    %v266 = vcombine.high %v239, %v253
    %v267 = vcombine.low %v246, %v260
    %v268 = vcombine.high %v246, %v260
    %v270 = vunpack.c.l.s4 1966171168
    %v271 = vunpack.c.0.s8 %v270
    %v272 = vlaneseq
    %v273 = vshrl.u32 %v272, 7
    %v274 = vsub.s32 %v271, %v273
    %v275 = vrot.slane %v261, %v274
    %v277 = vunpack.c.l.s4 1966171168
    %v278 = vunpack.c.0.s8 %v277
    %v279 = vlaneseq
    %v280 = vshrl.u32 %v279, 7
    %v281 = vsub.s32 %v278, %v280
    %v282 = vrot.slane %v263, %v281
    %v284 = vunpack.c.l.s4 1966171168
    %v285 = vunpack.c.0.s8 %v284
    %v286 = vlaneseq
    %v287 = vshrl.u32 %v286, 7
    %v288 = vsub.s32 %v285, %v287
    %v289 = vrot.slane %v262, %v288
    %v291 = vunpack.c.l.s4 1966171168
    %v292 = vunpack.c.0.s8 %v291
    %v293 = vlaneseq
    %v294 = vshrl.u32 %v293, 7
    %v295 = vsub.s32 %v292, %v294
    %v296 = vrot.slane %v264, %v295
    %v298 = vunpack.c.l.s4 1966171168
    %v299 = vunpack.c.0.s8 %v298
    %v300 = vlaneseq
    %v301 = vshrl.u32 %v300, 7
    %v302 = vsub.s32 %v299, %v301
    %v303 = vrot.slane %v265, %v302
    %v305 = vunpack.c.l.s4 1966171168
    %v306 = vunpack.c.0.s8 %v305
    %v307 = vlaneseq
    %v308 = vshrl.u32 %v307, 7
    %v309 = vsub.s32 %v306, %v308
    %v310 = vrot.slane %v267, %v309
    %v312 = vunpack.c.l.s4 1966171168
    %v313 = vunpack.c.0.s8 %v312
    %v314 = vlaneseq
    %v315 = vshrl.u32 %v314, 7
    %v316 = vsub.s32 %v313, %v315
    %v317 = vrot.slane %v266, %v316
    %v319 = vunpack.c.l.s4 1966171168
    %v320 = vunpack.c.0.s8 %v319
    %v321 = vlaneseq
    %v322 = vshrl.u32 %v321, 7
    %v323 = vsub.s32 %v320, %v322
    %v324 = vrot.slane %v268, %v323
    %v325 = vcombine.low %v275, %v303
    %v326 = vcombine.high %v275, %v303
    %v327 = vcombine.low %v282, %v310
    %v328 = vcombine.high %v282, %v310
    %v329 = vcombine.low %v289, %v317
    %v330 = vcombine.high %v289, %v317
    %v331 = vcombine.low %v296, %v324
    %v332 = vcombine.high %v296, %v324
    %v349 = vpack.c.bf16 %v189, %v189
    %v350 = vpack.c.bf16 %v193, %v193
    %v351 = vpack.c.bf16 %v190, %v190
    %v352 = vpack.c.bf16 %v194, %v194
    %v353 = vpack.c.bf16 %v191, %v191
    %v354 = vpack.c.bf16 %v195, %v195
    %v355 = vpack.c.bf16 %v192, %v192
    %v356 = vpack.c.bf16 %v196, %v196
    %v357 = vpack.c.bf16 %v325, %v325
    %v358 = vpack.c.bf16 %v329, %v329
    %v359 = vpack.c.bf16 %v326, %v326
    %v360 = vpack.c.bf16 %v330, %v330
    %v361 = vpack.c.bf16 %v327, %v327
    %v362 = vpack.c.bf16 %v331, %v331
    %v363 = vpack.c.bf16 %v328, %v328
    %v364 = vpack.c.bf16 %v332, %v332
    %v365 = vld [vmem:[#allocation2] sm:$0xf]
    %v366 = vld [vmem:[#allocation2 + $0x4] sm:$0xf]
    %v367 = vld [vmem:[#allocation2 + $0x8] sm:$0xf]
    %v368 = vld [vmem:[#allocation2 + $0xc] sm:$0xf]
    %v369 = vld [vmem:[#allocation2 + $0x10] sm:$0xf]
    %v370 = vld [vmem:[#allocation2 + $0x14] sm:$0xf]
    %v371 = vld [vmem:[#allocation2 + $0x18] sm:$0xf]
    %v372 = vld [vmem:[#allocation2 + $0x1c] sm:$0xf]
    %v373 = vld [vmem:[#allocation2 + $0x20] sm:$0xf]
    %v374 = vld [vmem:[#allocation2 + $0x24] sm:$0xf]
    %v375 = vld [vmem:[#allocation2 + $0x28] sm:$0xf]
    %v376 = vld [vmem:[#allocation2 + $0x2c] sm:$0xf]
    %v377 = vld [vmem:[#allocation2 + $0x30] sm:$0xf]
    %v378 = vld [vmem:[#allocation2 + $0x34] sm:$0xf]
    %v379 = vld [vmem:[#allocation2 + $0x38] sm:$0xf]
    %v380 = vld [vmem:[#allocation2 + $0x3c] sm:$0xf]
    %v381 = vld [vmem:[#allocation2 + $0x40] sm:$0xf]
    %v382 = vld [vmem:[#allocation2 + $0x44] sm:$0xf]
    %v383 = vld [vmem:[#allocation2 + $0x48] sm:$0xf]
    %v384 = vld [vmem:[#allocation2 + $0x4c] sm:$0xf]
    %v385 = vld [vmem:[#allocation2 + $0x50] sm:$0xf]
    %v386 = vld [vmem:[#allocation2 + $0x54] sm:$0xf]
    %v387 = vld [vmem:[#allocation2 + $0x58] sm:$0xf]
    %v388 = vld [vmem:[#allocation2 + $0x5c] sm:$0xf]
    %v389 = vld [vmem:[#allocation2 + $0x60] sm:$0xf]
    %v390 = vld [vmem:[#allocation2 + $0x64] sm:$0xf]
    %v391 = vld [vmem:[#allocation2 + $0x68] sm:$0xf]
    %v392 = vld [vmem:[#allocation2 + $0x6c] sm:$0xf]
    %v393 = vld [vmem:[#allocation2 + $0x70] sm:$0xf]
    %v394 = vld [vmem:[#allocation2 + $0x74] sm:$0xf]
    %v395 = vld [vmem:[#allocation2 + $0x78] sm:$0xf]
    %v396 = vld [vmem:[#allocation2 + $0x7c] sm:$0xf]
    %v397 = vld [vmem:[#allocation2 + $0x80] sm:$0xf]
    %v398 = vld [vmem:[#allocation2 + $0x84] sm:$0xf]
    %v399 = vld [vmem:[#allocation2 + $0x88] sm:$0xf]
    %v400 = vld [vmem:[#allocation2 + $0x8c] sm:$0xf]
    %v401 = vld [vmem:[#allocation2 + $0x90] sm:$0xf]
    %v402 = vld [vmem:[#allocation2 + $0x94] sm:$0xf]
    %v403 = vld [vmem:[#allocation2 + $0x98] sm:$0xf]
    %v404 = vld [vmem:[#allocation2 + $0x9c] sm:$0xf]
    %v405 = vld [vmem:[#allocation2 + $0xa0] sm:$0xf]
    %v406 = vld [vmem:[#allocation2 + $0xa4] sm:$0xf]
    %v407 = vld [vmem:[#allocation2 + $0xa8] sm:$0xf]
    %v408 = vld [vmem:[#allocation2 + $0xac] sm:$0xf]
    %v409 = vld [vmem:[#allocation2 + $0xb0] sm:$0xf]
    %v410 = vld [vmem:[#allocation2 + $0xb4] sm:$0xf]
    %v411 = vld [vmem:[#allocation2 + $0xb8] sm:$0xf]
    %v412 = vld [vmem:[#allocation2 + $0xbc] sm:$0xf]
    %v413 = vld [vmem:[#allocation2 + $0xc0] sm:$0xf]
    %v414 = vld [vmem:[#allocation2 + $0xc4] sm:$0xf]
    %v415 = vld [vmem:[#allocation2 + $0xc8] sm:$0xf]
    %v416 = vld [vmem:[#allocation2 + $0xcc] sm:$0xf]
    %v417 = vld [vmem:[#allocation2 + $0xd0] sm:$0xf]
    %v418 = vld [vmem:[#allocation2 + $0xd4] sm:$0xf]
    %v419 = vld [vmem:[#allocation2 + $0xd8] sm:$0xf]
    %v420 = vld [vmem:[#allocation2 + $0xdc] sm:$0xf]
    %v421 = vld [vmem:[#allocation2 + $0xe0] sm:$0xf]
    %v422 = vld [vmem:[#allocation2 + $0xe4] sm:$0xf]
    %v423 = vld [vmem:[#allocation2 + $0xe8] sm:$0xf]
    %v424 = vld [vmem:[#allocation2 + $0xec] sm:$0xf]
    %v425 = vld [vmem:[#allocation2 + $0xf0] sm:$0xf]
    %v426 = vld [vmem:[#allocation2 + $0xf4] sm:$0xf]
    %v427 = vld [vmem:[#allocation2 + $0xf8] sm:$0xf]
    %v428 = vld [vmem:[#allocation2 + $0xfc] sm:$0xf]
    %v429 = vld [vmem:[#allocation2 + $0x100] sm:$0xf]
    %v430 = vld [vmem:[#allocation2 + $0x104] sm:$0xf]
    %v431 = vld [vmem:[#allocation2 + $0x108] sm:$0xf]
    %v432 = vld [vmem:[#allocation2 + $0x10c] sm:$0xf]
    %v433 = vld [vmem:[#allocation2 + $0x110] sm:$0xf]
    %v434 = vld [vmem:[#allocation2 + $0x114] sm:$0xf]
    %v435 = vld [vmem:[#allocation2 + $0x118] sm:$0xf]
    %v436 = vld [vmem:[#allocation2 + $0x11c] sm:$0xf]
    %v437 = vld [vmem:[#allocation2 + $0x120] sm:$0xf]
    %v438 = vld [vmem:[#allocation2 + $0x124] sm:$0xf]
    %v439 = vld [vmem:[#allocation2 + $0x128] sm:$0xf]
    %v440 = vld [vmem:[#allocation2 + $0x12c] sm:$0xf]
    %v441 = vld [vmem:[#allocation2 + $0x130] sm:$0xf]
    %v442 = vld [vmem:[#allocation2 + $0x134] sm:$0xf]
    %v443 = vld [vmem:[#allocation2 + $0x138] sm:$0xf]
    %v444 = vld [vmem:[#allocation2 + $0x13c] sm:$0xf]
    %v445 = vld [vmem:[#allocation2 + $0x140] sm:$0xf]
    %v446 = vld [vmem:[#allocation2 + $0x144] sm:$0xf]
    %v447 = vld [vmem:[#allocation2 + $0x148] sm:$0xf]
    %v448 = vld [vmem:[#allocation2 + $0x14c] sm:$0xf]
    %v449 = vld [vmem:[#allocation2 + $0x150] sm:$0xf]
    %v450 = vld [vmem:[#allocation2 + $0x154] sm:$0xf]
    %v451 = vld [vmem:[#allocation2 + $0x158] sm:$0xf]
    %v452 = vld [vmem:[#allocation2 + $0x15c] sm:$0xf]
    %v453 = vld [vmem:[#allocation2 + $0x160] sm:$0xf]
    %v454 = vld [vmem:[#allocation2 + $0x164] sm:$0xf]
    %v455 = vld [vmem:[#allocation2 + $0x168] sm:$0xf]
    %v456 = vld [vmem:[#allocation2 + $0x16c] sm:$0xf]
    %v457 = vld [vmem:[#allocation2 + $0x170] sm:$0xf]
    %v458 = vld [vmem:[#allocation2 + $0x174] sm:$0xf]
    %v459 = vld [vmem:[#allocation2 + $0x178] sm:$0xf]
    %v460 = vld [vmem:[#allocation2 + $0x17c] sm:$0xf]
    %v461 = vld [vmem:[#allocation2 + $0x180] sm:$0xf]
    %v462 = vld [vmem:[#allocation2 + $0x184] sm:$0xf]
    %v463 = vld [vmem:[#allocation2 + $0x188] sm:$0xf]
    %v464 = vld [vmem:[#allocation2 + $0x18c] sm:$0xf]
    %v465 = vld [vmem:[#allocation2 + $0x190] sm:$0xf]
    %v466 = vld [vmem:[#allocation2 + $0x194] sm:$0xf]
    %v467 = vld [vmem:[#allocation2 + $0x198] sm:$0xf]
    %v468 = vld [vmem:[#allocation2 + $0x19c] sm:$0xf]
    %v469 = vld [vmem:[#allocation2 + $0x1a0] sm:$0xf]
    %v470 = vld [vmem:[#allocation2 + $0x1a4] sm:$0xf]
    %v471 = vld [vmem:[#allocation2 + $0x1a8] sm:$0xf]
    %v472 = vld [vmem:[#allocation2 + $0x1ac] sm:$0xf]
    %v473 = vld [vmem:[#allocation2 + $0x1b0] sm:$0xf]
    %v474 = vld [vmem:[#allocation2 + $0x1b4] sm:$0xf]
    %v475 = vld [vmem:[#allocation2 + $0x1b8] sm:$0xf]
    %v476 = vld [vmem:[#allocation2 + $0x1bc] sm:$0xf]
    %v477 = vld [vmem:[#allocation2 + $0x1c0] sm:$0xf]
    %v478 = vld [vmem:[#allocation2 + $0x1c4] sm:$0xf]
    %v479 = vld [vmem:[#allocation2 + $0x1c8] sm:$0xf]
    %v480 = vld [vmem:[#allocation2 + $0x1cc] sm:$0xf]
    %v481 = vld [vmem:[#allocation2 + $0x1d0] sm:$0xf]
    %v482 = vld [vmem:[#allocation2 + $0x1d4] sm:$0xf]
    %v483 = vld [vmem:[#allocation2 + $0x1d8] sm:$0xf]
    %v484 = vld [vmem:[#allocation2 + $0x1dc] sm:$0xf]
    %v485 = vld [vmem:[#allocation2 + $0x1e0] sm:$0xf]
    %v486 = vld [vmem:[#allocation2 + $0x1e4] sm:$0xf]
    %v487 = vld [vmem:[#allocation2 + $0x1e8] sm:$0xf]
    %v488 = vld [vmem:[#allocation2 + $0x1ec] sm:$0xf]
    %v489 = vld [vmem:[#allocation2 + $0x1f0] sm:$0xf]
    %v490 = vld [vmem:[#allocation2 + $0x1f4] sm:$0xf]
    %v491 = vld [vmem:[#allocation2 + $0x1f8] sm:$0xf]
    %v492 = vld [vmem:[#allocation2 + $0x1fc] sm:$0xf]
    %v493 = vld [vmem:[#allocation2 + $0x200] sm:$0xf]
    %v494 = vld [vmem:[#allocation2 + $0x204] sm:$0xf]
    %v495 = vld [vmem:[#allocation2 + $0x208] sm:$0xf]
    %v496 = vld [vmem:[#allocation2 + $0x20c] sm:$0xf]
    %v497 = vld [vmem:[#allocation2 + $0x210] sm:$0xf]
    %v498 = vld [vmem:[#allocation2 + $0x214] sm:$0xf]
    %v499 = vld [vmem:[#allocation2 + $0x218] sm:$0xf]
    %v500 = vld [vmem:[#allocation2 + $0x21c] sm:$0xf]
    %v501 = vld [vmem:[#allocation2 + $0x220] sm:$0xf]
    %v502 = vld [vmem:[#allocation2 + $0x224] sm:$0xf]
    %v503 = vld [vmem:[#allocation2 + $0x228] sm:$0xf]
    %v504 = vld [vmem:[#allocation2 + $0x22c] sm:$0xf]
    %v505 = vld [vmem:[#allocation2 + $0x230] sm:$0xf]
    %v506 = vld [vmem:[#allocation2 + $0x234] sm:$0xf]
    %v507 = vld [vmem:[#allocation2 + $0x238] sm:$0xf]
    %v508 = vld [vmem:[#allocation2 + $0x23c] sm:$0xf]
    %v509 = vld [vmem:[#allocation2 + $0x240] sm:$0xf]
    %v510 = vld [vmem:[#allocation2 + $0x244] sm:$0xf]
    %v511 = vld [vmem:[#allocation2 + $0x248] sm:$0xf]
    %v512 = vld [vmem:[#allocation2 + $0x24c] sm:$0xf]
    %v513 = vld [vmem:[#allocation2 + $0x250] sm:$0xf]
    %v514 = vld [vmem:[#allocation2 + $0x254] sm:$0xf]
    %v515 = vld [vmem:[#allocation2 + $0x258] sm:$0xf]
    %v516 = vld [vmem:[#allocation2 + $0x25c] sm:$0xf]
    %v517 = vld [vmem:[#allocation2 + $0x260] sm:$0xf]
    %v518 = vld [vmem:[#allocation2 + $0x264] sm:$0xf]
    %v519 = vld [vmem:[#allocation2 + $0x268] sm:$0xf]
    %v520 = vld [vmem:[#allocation2 + $0x26c] sm:$0xf]
    %v521 = vld [vmem:[#allocation2 + $0x270] sm:$0xf]
    %v522 = vld [vmem:[#allocation2 + $0x274] sm:$0xf]
    %v523 = vld [vmem:[#allocation2 + $0x278] sm:$0xf]
    %v524 = vld [vmem:[#allocation2 + $0x27c] sm:$0xf]
    %v525 = vld [vmem:[#allocation2 + $0x280] sm:$0xf]
    %v526 = vld [vmem:[#allocation2 + $0x284] sm:$0xf]
    %v527 = vld [vmem:[#allocation2 + $0x288] sm:$0xf]
    %v528 = vld [vmem:[#allocation2 + $0x28c] sm:$0xf]
    %v529 = vld [vmem:[#allocation2 + $0x290] sm:$0xf]
    %v530 = vld [vmem:[#allocation2 + $0x294] sm:$0xf]
    %v531 = vld [vmem:[#allocation2 + $0x298] sm:$0xf]
    %v532 = vld [vmem:[#allocation2 + $0x29c] sm:$0xf]
    %v533 = vld [vmem:[#allocation2 + $0x2a0] sm:$0xf]
    %v534 = vld [vmem:[#allocation2 + $0x2a4] sm:$0xf]
    %v535 = vld [vmem:[#allocation2 + $0x2a8] sm:$0xf]
    %v536 = vld [vmem:[#allocation2 + $0x2ac] sm:$0xf]
    %v537 = vld [vmem:[#allocation2 + $0x2b0] sm:$0xf]
    %v538 = vld [vmem:[#allocation2 + $0x2b4] sm:$0xf]
    %v539 = vld [vmem:[#allocation2 + $0x2b8] sm:$0xf]
    %v540 = vld [vmem:[#allocation2 + $0x2bc] sm:$0xf]
    %v541 = vld [vmem:[#allocation2 + $0x2c0] sm:$0xf]
    %v542 = vld [vmem:[#allocation2 + $0x2c4] sm:$0xf]
    %v543 = vld [vmem:[#allocation2 + $0x2c8] sm:$0xf]
    %v544 = vld [vmem:[#allocation2 + $0x2cc] sm:$0xf]
    %v545 = vld [vmem:[#allocation2 + $0x2d0] sm:$0xf]
    %v546 = vld [vmem:[#allocation2 + $0x2d4] sm:$0xf]
    %v547 = vld [vmem:[#allocation2 + $0x2d8] sm:$0xf]
    %v548 = vld [vmem:[#allocation2 + $0x2dc] sm:$0xf]
    %v549 = vld [vmem:[#allocation2 + $0x2e0] sm:$0xf]
    %v550 = vld [vmem:[#allocation2 + $0x2e4] sm:$0xf]
    %v551 = vld [vmem:[#allocation2 + $0x2e8] sm:$0xf]
    %v552 = vld [vmem:[#allocation2 + $0x2ec] sm:$0xf]
    %v553 = vld [vmem:[#allocation2 + $0x2f0] sm:$0xf]
    %v554 = vld [vmem:[#allocation2 + $0x2f4] sm:$0xf]
    %v555 = vld [vmem:[#allocation2 + $0x2f8] sm:$0xf]
    %v556 = vld [vmem:[#allocation2 + $0x2fc] sm:$0xf]
    %v557 = vld [vmem:[#allocation2 + $0x300] sm:$0xf]
    %v558 = vld [vmem:[#allocation2 + $0x304] sm:$0xf]
    %v559 = vld [vmem:[#allocation2 + $0x308] sm:$0xf]
    %v560 = vld [vmem:[#allocation2 + $0x30c] sm:$0xf]
    %v561 = vld [vmem:[#allocation2 + $0x310] sm:$0xf]
    %v562 = vld [vmem:[#allocation2 + $0x314] sm:$0xf]
    %v563 = vld [vmem:[#allocation2 + $0x318] sm:$0xf]
    %v564 = vld [vmem:[#allocation2 + $0x31c] sm:$0xf]
    %v565 = vld [vmem:[#allocation2 + $0x320] sm:$0xf]
    %v566 = vld [vmem:[#allocation2 + $0x324] sm:$0xf]
    %v567 = vld [vmem:[#allocation2 + $0x328] sm:$0xf]
    %v568 = vld [vmem:[#allocation2 + $0x32c] sm:$0xf]
    %v569 = vld [vmem:[#allocation2 + $0x330] sm:$0xf]
    %v570 = vld [vmem:[#allocation2 + $0x334] sm:$0xf]
    %v571 = vld [vmem:[#allocation2 + $0x338] sm:$0xf]
    %v572 = vld [vmem:[#allocation2 + $0x33c] sm:$0xf]
    %v573 = vld [vmem:[#allocation2 + $0x340] sm:$0xf]
    %v574 = vld [vmem:[#allocation2 + $0x344] sm:$0xf]
    %v575 = vld [vmem:[#allocation2 + $0x348] sm:$0xf]
    %v576 = vld [vmem:[#allocation2 + $0x34c] sm:$0xf]
    %v577 = vld [vmem:[#allocation2 + $0x350] sm:$0xf]
    %v578 = vld [vmem:[#allocation2 + $0x354] sm:$0xf]
    %v579 = vld [vmem:[#allocation2 + $0x358] sm:$0xf]
    %v580 = vld [vmem:[#allocation2 + $0x35c] sm:$0xf]
    %v581 = vld [vmem:[#allocation2 + $0x360] sm:$0xf]
    %v582 = vld [vmem:[#allocation2 + $0x364] sm:$0xf]
    %v583 = vld [vmem:[#allocation2 + $0x368] sm:$0xf]
    %v584 = vld [vmem:[#allocation2 + $0x36c] sm:$0xf]
    %v585 = vld [vmem:[#allocation2 + $0x370] sm:$0xf]
    %v586 = vld [vmem:[#allocation2 + $0x374] sm:$0xf]
    %v587 = vld [vmem:[#allocation2 + $0x378] sm:$0xf]
    %v588 = vld [vmem:[#allocation2 + $0x37c] sm:$0xf]
    %v589 = vld [vmem:[#allocation2 + $0x380] sm:$0xf]
    %v590 = vld [vmem:[#allocation2 + $0x384] sm:$0xf]
    %v591 = vld [vmem:[#allocation2 + $0x388] sm:$0xf]
    %v592 = vld [vmem:[#allocation2 + $0x38c] sm:$0xf]
    %v593 = vld [vmem:[#allocation2 + $0x390] sm:$0xf]
    %v594 = vld [vmem:[#allocation2 + $0x394] sm:$0xf]
    %v595 = vld [vmem:[#allocation2 + $0x398] sm:$0xf]
    %v596 = vld [vmem:[#allocation2 + $0x39c] sm:$0xf]
    %v597 = vld [vmem:[#allocation2 + $0x3a0] sm:$0xf]
    %v598 = vld [vmem:[#allocation2 + $0x3a4] sm:$0xf]
    %v599 = vld [vmem:[#allocation2 + $0x3a8] sm:$0xf]
    %v600 = vld [vmem:[#allocation2 + $0x3ac] sm:$0xf]
    %v601 = vld [vmem:[#allocation2 + $0x3b0] sm:$0xf]
    %v602 = vld [vmem:[#allocation2 + $0x3b4] sm:$0xf]
    %v603 = vld [vmem:[#allocation2 + $0x3b8] sm:$0xf]
    %v604 = vld [vmem:[#allocation2 + $0x3bc] sm:$0xf]
    %v605 = vld [vmem:[#allocation2 + $0x3c0] sm:$0xf]
    %v606 = vld [vmem:[#allocation2 + $0x3c4] sm:$0xf]
    %v607 = vld [vmem:[#allocation2 + $0x3c8] sm:$0xf]
    %v608 = vld [vmem:[#allocation2 + $0x3cc] sm:$0xf]
    %v609 = vld [vmem:[#allocation2 + $0x3d0] sm:$0xf]
    %v610 = vld [vmem:[#allocation2 + $0x3d4] sm:$0xf]
    %v611 = vld [vmem:[#allocation2 + $0x3d8] sm:$0xf]
    %v612 = vld [vmem:[#allocation2 + $0x3dc] sm:$0xf]
    %v613 = vld [vmem:[#allocation2 + $0x3e0] sm:$0xf]
    %v614 = vld [vmem:[#allocation2 + $0x3e4] sm:$0xf]
    %v615 = vld [vmem:[#allocation2 + $0x3e8] sm:$0xf]
    %v616 = vld [vmem:[#allocation2 + $0x3ec] sm:$0xf]
    %v617 = vld [vmem:[#allocation2 + $0x3f0] sm:$0xf]
    %v618 = vld [vmem:[#allocation2 + $0x3f4] sm:$0xf]
    %v619 = vld [vmem:[#allocation2 + $0x3f8] sm:$0xf]
    %v620 = vld [vmem:[#allocation2 + $0x3fc] sm:$0xf]
    %v621 = vld [vmem:[%s2] sm:$0x1]
    %v623 = vlaneseq
    %v624 = vshrl.u32 %v623, 7
    %v625 = vsub.s32 0, %v624
    %v626 = vrot.slane %v621, %v625
    %v884 = vunpack.c.l.b16 %v365
    %v885 = vunpack.c.l.b16 %v366
    %v886 = vunpack.c.l.b16 %v367
    %v887 = vunpack.c.l.b16 %v368
    %v888 = vunpack.c.l.b16 %v369
    %v889 = vunpack.c.l.b16 %v370
    %v890 = vunpack.c.l.b16 %v371
    %v891 = vunpack.c.l.b16 %v372
    %v892 = vunpack.c.l.b16 %v373
    %v893 = vunpack.c.l.b16 %v374
    %v894 = vunpack.c.l.b16 %v375
    %v895 = vunpack.c.l.b16 %v376
    %v896 = vunpack.c.l.b16 %v377
    %v897 = vunpack.c.l.b16 %v378
    %v898 = vunpack.c.l.b16 %v379
    %v899 = vunpack.c.l.b16 %v380
    %v900 = vunpack.c.l.b16 %v381
    %v901 = vunpack.c.l.b16 %v382
    %v902 = vunpack.c.l.b16 %v383
    %v903 = vunpack.c.l.b16 %v384
    %v904 = vunpack.c.l.b16 %v385
    %v905 = vunpack.c.l.b16 %v386
    %v906 = vunpack.c.l.b16 %v387
    %v907 = vunpack.c.l.b16 %v388
    %v908 = vunpack.c.l.b16 %v389
    %v909 = vunpack.c.l.b16 %v390
    %v910 = vunpack.c.l.b16 %v391
    %v911 = vunpack.c.l.b16 %v392
    %v912 = vunpack.c.l.b16 %v393
    %v913 = vunpack.c.l.b16 %v394
    %v914 = vunpack.c.l.b16 %v395
    %v915 = vunpack.c.l.b16 %v396
    %v916 = vunpack.c.l.b16 %v397
    %v917 = vunpack.c.l.b16 %v398
    %v918 = vunpack.c.l.b16 %v399
    %v919 = vunpack.c.l.b16 %v400
    %v920 = vunpack.c.l.b16 %v401
    %v921 = vunpack.c.l.b16 %v402
    %v922 = vunpack.c.l.b16 %v403
    %v923 = vunpack.c.l.b16 %v404
    %v924 = vunpack.c.l.b16 %v405
    %v925 = vunpack.c.l.b16 %v406
    %v926 = vunpack.c.l.b16 %v407
    %v927 = vunpack.c.l.b16 %v408
    %v928 = vunpack.c.l.b16 %v409
    %v929 = vunpack.c.l.b16 %v410
    %v930 = vunpack.c.l.b16 %v411
    %v931 = vunpack.c.l.b16 %v412
    %v932 = vunpack.c.l.b16 %v413
    %v933 = vunpack.c.l.b16 %v414
    %v934 = vunpack.c.l.b16 %v415
    %v935 = vunpack.c.l.b16 %v416
    %v936 = vunpack.c.l.b16 %v417
    %v937 = vunpack.c.l.b16 %v418
    %v938 = vunpack.c.l.b16 %v419
    %v939 = vunpack.c.l.b16 %v420
    %v940 = vunpack.c.l.b16 %v421
    %v941 = vunpack.c.l.b16 %v422
    %v942 = vunpack.c.l.b16 %v423
    %v943 = vunpack.c.l.b16 %v424
    %v944 = vunpack.c.l.b16 %v425
    %v945 = vunpack.c.l.b16 %v426
    %v946 = vunpack.c.l.b16 %v427
    %v947 = vunpack.c.l.b16 %v428
    %v948 = vunpack.c.l.b16 %v429
    %v949 = vunpack.c.l.b16 %v430
    %v950 = vunpack.c.l.b16 %v431
    %v951 = vunpack.c.l.b16 %v432
    %v952 = vunpack.c.l.b16 %v433
    %v953 = vunpack.c.l.b16 %v434
    %v954 = vunpack.c.l.b16 %v435
    %v955 = vunpack.c.l.b16 %v436
    %v956 = vunpack.c.l.b16 %v437
    %v957 = vunpack.c.l.b16 %v438
    %v958 = vunpack.c.l.b16 %v439
    %v959 = vunpack.c.l.b16 %v440
    %v960 = vunpack.c.l.b16 %v441
    %v961 = vunpack.c.l.b16 %v442
    %v962 = vunpack.c.l.b16 %v443
    %v963 = vunpack.c.l.b16 %v444
    %v964 = vunpack.c.l.b16 %v445
    %v965 = vunpack.c.l.b16 %v446
    %v966 = vunpack.c.l.b16 %v447
    %v967 = vunpack.c.l.b16 %v448
    %v968 = vunpack.c.l.b16 %v449
    %v969 = vunpack.c.l.b16 %v450
    %v970 = vunpack.c.l.b16 %v451
    %v971 = vunpack.c.l.b16 %v452
    %v972 = vunpack.c.l.b16 %v453
    %v973 = vunpack.c.l.b16 %v454
    %v974 = vunpack.c.l.b16 %v455
    %v975 = vunpack.c.l.b16 %v456
    %v976 = vunpack.c.l.b16 %v457
    %v977 = vunpack.c.l.b16 %v458
    %v978 = vunpack.c.l.b16 %v459
    %v979 = vunpack.c.l.b16 %v460
    %v980 = vunpack.c.l.b16 %v461
    %v981 = vunpack.c.l.b16 %v462
    %v982 = vunpack.c.l.b16 %v463
    %v983 = vunpack.c.l.b16 %v464
    %v984 = vunpack.c.l.b16 %v465
    %v985 = vunpack.c.l.b16 %v466
    %v986 = vunpack.c.l.b16 %v467
    %v987 = vunpack.c.l.b16 %v468
    %v988 = vunpack.c.l.b16 %v469
    %v989 = vunpack.c.l.b16 %v470
    %v990 = vunpack.c.l.b16 %v471
    %v991 = vunpack.c.l.b16 %v472
    %v992 = vunpack.c.l.b16 %v473
    %v993 = vunpack.c.l.b16 %v474
    %v994 = vunpack.c.l.b16 %v475
    %v995 = vunpack.c.l.b16 %v476
    %v996 = vunpack.c.l.b16 %v477
    %v997 = vunpack.c.l.b16 %v478
    %v998 = vunpack.c.l.b16 %v479
    %v999 = vunpack.c.l.b16 %v480
    %v1000 = vunpack.c.l.b16 %v481
    %v1001 = vunpack.c.l.b16 %v482
    %v1002 = vunpack.c.l.b16 %v483
    %v1003 = vunpack.c.l.b16 %v484
    %v1004 = vunpack.c.l.b16 %v485
    %v1005 = vunpack.c.l.b16 %v486
    %v1006 = vunpack.c.l.b16 %v487
    %v1007 = vunpack.c.l.b16 %v488
    %v1008 = vunpack.c.l.b16 %v489
    %v1009 = vunpack.c.l.b16 %v490
    %v1010 = vunpack.c.l.b16 %v491
    %v1011 = vunpack.c.l.b16 %v492
    %v1012 = vunpack.c.l.b16 %v493
    %v1013 = vunpack.c.l.b16 %v494
    %v1014 = vunpack.c.l.b16 %v495
    %v1015 = vunpack.c.l.b16 %v496
    %v1016 = vunpack.c.l.b16 %v497
    %v1017 = vunpack.c.l.b16 %v498
    %v1018 = vunpack.c.l.b16 %v499
    %v1019 = vunpack.c.l.b16 %v500
    %v1020 = vunpack.c.l.b16 %v501
    %v1021 = vunpack.c.l.b16 %v502
    %v1022 = vunpack.c.l.b16 %v503
    %v1023 = vunpack.c.l.b16 %v504
    %v1024 = vunpack.c.l.b16 %v505
    %v1025 = vunpack.c.l.b16 %v506
    %v1026 = vunpack.c.l.b16 %v507
    %v1027 = vunpack.c.l.b16 %v508
    %v1028 = vunpack.c.l.b16 %v509
    %v1029 = vunpack.c.l.b16 %v510
    %v1030 = vunpack.c.l.b16 %v511
    %v1031 = vunpack.c.l.b16 %v512
    %v1032 = vunpack.c.l.b16 %v513
    %v1033 = vunpack.c.l.b16 %v514
    %v1034 = vunpack.c.l.b16 %v515
    %v1035 = vunpack.c.l.b16 %v516
    %v1036 = vunpack.c.l.b16 %v517
    %v1037 = vunpack.c.l.b16 %v518
    %v1038 = vunpack.c.l.b16 %v519
    %v1039 = vunpack.c.l.b16 %v520
    %v1040 = vunpack.c.l.b16 %v521
    %v1041 = vunpack.c.l.b16 %v522
    %v1042 = vunpack.c.l.b16 %v523
    %v1043 = vunpack.c.l.b16 %v524
    %v1044 = vunpack.c.l.b16 %v525
    %v1045 = vunpack.c.l.b16 %v526
    %v1046 = vunpack.c.l.b16 %v527
    %v1047 = vunpack.c.l.b16 %v528
    %v1048 = vunpack.c.l.b16 %v529
    %v1049 = vunpack.c.l.b16 %v530
    %v1050 = vunpack.c.l.b16 %v531
    %v1051 = vunpack.c.l.b16 %v532
    %v1052 = vunpack.c.l.b16 %v533
    %v1053 = vunpack.c.l.b16 %v534
    %v1054 = vunpack.c.l.b16 %v535
    %v1055 = vunpack.c.l.b16 %v536
    %v1056 = vunpack.c.l.b16 %v537
    %v1057 = vunpack.c.l.b16 %v538
    %v1058 = vunpack.c.l.b16 %v539
    %v1059 = vunpack.c.l.b16 %v540
    %v1060 = vunpack.c.l.b16 %v541
    %v1061 = vunpack.c.l.b16 %v542
    %v1062 = vunpack.c.l.b16 %v543
    %v1063 = vunpack.c.l.b16 %v544
    %v1064 = vunpack.c.l.b16 %v545
    %v1065 = vunpack.c.l.b16 %v546
    %v1066 = vunpack.c.l.b16 %v547
    %v1067 = vunpack.c.l.b16 %v548
    %v1068 = vunpack.c.l.b16 %v549
    %v1069 = vunpack.c.l.b16 %v550
    %v1070 = vunpack.c.l.b16 %v551
    %v1071 = vunpack.c.l.b16 %v552
    %v1072 = vunpack.c.l.b16 %v553
    %v1073 = vunpack.c.l.b16 %v554
    %v1074 = vunpack.c.l.b16 %v555
    %v1075 = vunpack.c.l.b16 %v556
    %v1076 = vunpack.c.l.b16 %v557
    %v1077 = vunpack.c.l.b16 %v558
    %v1078 = vunpack.c.l.b16 %v559
    %v1079 = vunpack.c.l.b16 %v560
    %v1080 = vunpack.c.l.b16 %v561
    %v1081 = vunpack.c.l.b16 %v562
    %v1082 = vunpack.c.l.b16 %v563
    %v1083 = vunpack.c.l.b16 %v564
    %v1084 = vunpack.c.l.b16 %v565
    %v1085 = vunpack.c.l.b16 %v566
    %v1086 = vunpack.c.l.b16 %v567
    %v1087 = vunpack.c.l.b16 %v568
    %v1088 = vunpack.c.l.b16 %v569
    %v1089 = vunpack.c.l.b16 %v570
    %v1090 = vunpack.c.l.b16 %v571
    %v1091 = vunpack.c.l.b16 %v572
    %v1092 = vunpack.c.l.b16 %v573
    %v1093 = vunpack.c.l.b16 %v574
    %v1094 = vunpack.c.l.b16 %v575
    %v1095 = vunpack.c.l.b16 %v576
    %v1096 = vunpack.c.l.b16 %v577
    %v1097 = vunpack.c.l.b16 %v578
    %v1098 = vunpack.c.l.b16 %v579
    %v1099 = vunpack.c.l.b16 %v580
    %v1100 = vunpack.c.l.b16 %v581
    %v1101 = vunpack.c.l.b16 %v582
    %v1102 = vunpack.c.l.b16 %v583
    %v1103 = vunpack.c.l.b16 %v584
    %v1104 = vunpack.c.l.b16 %v585
    %v1105 = vunpack.c.l.b16 %v586
    %v1106 = vunpack.c.l.b16 %v587
    %v1107 = vunpack.c.l.b16 %v588
    %v1108 = vunpack.c.l.b16 %v589
    %v1109 = vunpack.c.l.b16 %v590
    %v1110 = vunpack.c.l.b16 %v591
    %v1111 = vunpack.c.l.b16 %v592
    %v1112 = vunpack.c.l.b16 %v593
    %v1113 = vunpack.c.l.b16 %v594
    %v1114 = vunpack.c.l.b16 %v595
    %v1115 = vunpack.c.l.b16 %v596
    %v1116 = vunpack.c.l.b16 %v597
    %v1117 = vunpack.c.l.b16 %v598
    %v1118 = vunpack.c.l.b16 %v599
    %v1119 = vunpack.c.l.b16 %v600
    %v1120 = vunpack.c.l.b16 %v601
    %v1121 = vunpack.c.l.b16 %v602
    %v1122 = vunpack.c.l.b16 %v603
    %v1123 = vunpack.c.l.b16 %v604
    %v1124 = vunpack.c.l.b16 %v605
    %v1125 = vunpack.c.l.b16 %v606
    %v1126 = vunpack.c.l.b16 %v607
    %v1127 = vunpack.c.l.b16 %v608
    %v1128 = vunpack.c.l.b16 %v609
    %v1129 = vunpack.c.l.b16 %v610
    %v1130 = vunpack.c.l.b16 %v611
    %v1131 = vunpack.c.l.b16 %v612
    %v1132 = vunpack.c.l.b16 %v613
    %v1133 = vunpack.c.l.b16 %v614
    %v1134 = vunpack.c.l.b16 %v615
    %v1135 = vunpack.c.l.b16 %v616
    %v1136 = vunpack.c.l.b16 %v617
    %v1137 = vunpack.c.l.b16 %v618
    %v1138 = vunpack.c.l.b16 %v619
    %v1139 = vunpack.c.l.b16 %v620
    %v1140 = vpack.c.b16 %v885, %v884
    %v1141 = vpack.c.b16 %v887, %v886
    %v1142 = vpack.c.b16 %v889, %v888
    %v1143 = vpack.c.b16 %v891, %v890
    %v1144 = vpack.c.b16 %v893, %v892
    %v1145 = vpack.c.b16 %v895, %v894
    %v1146 = vpack.c.b16 %v897, %v896
    %v1147 = vpack.c.b16 %v899, %v898
    %v1148 = vpack.c.b16 %v901, %v900
    %v1149 = vpack.c.b16 %v903, %v902
    %v1150 = vpack.c.b16 %v905, %v904
    %v1151 = vpack.c.b16 %v907, %v906
    %v1152 = vpack.c.b16 %v909, %v908
    %v1153 = vpack.c.b16 %v911, %v910
    %v1154 = vpack.c.b16 %v913, %v912
    %v1155 = vpack.c.b16 %v915, %v914
    %v1156 = vpack.c.b16 %v917, %v916
    %v1157 = vpack.c.b16 %v919, %v918
    %v1158 = vpack.c.b16 %v921, %v920
    %v1159 = vpack.c.b16 %v923, %v922
    %v1160 = vpack.c.b16 %v925, %v924
    %v1161 = vpack.c.b16 %v927, %v926
    %v1162 = vpack.c.b16 %v929, %v928
    %v1163 = vpack.c.b16 %v931, %v930
    %v1164 = vpack.c.b16 %v933, %v932
    %v1165 = vpack.c.b16 %v935, %v934
    %v1166 = vpack.c.b16 %v937, %v936
    %v1167 = vpack.c.b16 %v939, %v938
    %v1168 = vpack.c.b16 %v941, %v940
    %v1169 = vpack.c.b16 %v943, %v942
    %v1170 = vpack.c.b16 %v945, %v944
    %v1171 = vpack.c.b16 %v947, %v946
    %v1172 = vpack.c.b16 %v949, %v948
    %v1173 = vpack.c.b16 %v951, %v950
    %v1174 = vpack.c.b16 %v953, %v952
    %v1175 = vpack.c.b16 %v955, %v954
    %v1176 = vpack.c.b16 %v957, %v956
    %v1177 = vpack.c.b16 %v959, %v958
    %v1178 = vpack.c.b16 %v961, %v960
    %v1179 = vpack.c.b16 %v963, %v962
    %v1180 = vpack.c.b16 %v965, %v964
    %v1181 = vpack.c.b16 %v967, %v966
    %v1182 = vpack.c.b16 %v969, %v968
    %v1183 = vpack.c.b16 %v971, %v970
    %v1184 = vpack.c.b16 %v973, %v972
    %v1185 = vpack.c.b16 %v975, %v974
    %v1186 = vpack.c.b16 %v977, %v976
    %v1187 = vpack.c.b16 %v979, %v978
    %v1188 = vpack.c.b16 %v981, %v980
    %v1189 = vpack.c.b16 %v983, %v982
    %v1190 = vpack.c.b16 %v985, %v984
    %v1191 = vpack.c.b16 %v987, %v986
    %v1192 = vpack.c.b16 %v989, %v988
    %v1193 = vpack.c.b16 %v991, %v990
    %v1194 = vpack.c.b16 %v993, %v992
    %v1195 = vpack.c.b16 %v995, %v994
    %v1196 = vpack.c.b16 %v997, %v996
    %v1197 = vpack.c.b16 %v999, %v998
    %v1198 = vpack.c.b16 %v1001, %v1000
    %v1199 = vpack.c.b16 %v1003, %v1002
    %v1200 = vpack.c.b16 %v1005, %v1004
    %v1201 = vpack.c.b16 %v1007, %v1006
    %v1202 = vpack.c.b16 %v1009, %v1008
    %v1203 = vpack.c.b16 %v1011, %v1010
    %v1204 = vpack.c.b16 %v1013, %v1012
    %v1205 = vpack.c.b16 %v1015, %v1014
    %v1206 = vpack.c.b16 %v1017, %v1016
    %v1207 = vpack.c.b16 %v1019, %v1018
    %v1208 = vpack.c.b16 %v1021, %v1020
    %v1209 = vpack.c.b16 %v1023, %v1022
    %v1210 = vpack.c.b16 %v1025, %v1024
    %v1211 = vpack.c.b16 %v1027, %v1026
    %v1212 = vpack.c.b16 %v1029, %v1028
    %v1213 = vpack.c.b16 %v1031, %v1030
    %v1214 = vpack.c.b16 %v1033, %v1032
    %v1215 = vpack.c.b16 %v1035, %v1034
    %v1216 = vpack.c.b16 %v1037, %v1036
    %v1217 = vpack.c.b16 %v1039, %v1038
    %v1218 = vpack.c.b16 %v1041, %v1040
    %v1219 = vpack.c.b16 %v1043, %v1042
    %v1220 = vpack.c.b16 %v1045, %v1044
    %v1221 = vpack.c.b16 %v1047, %v1046
    %v1222 = vpack.c.b16 %v1049, %v1048
    %v1223 = vpack.c.b16 %v1051, %v1050
    %v1224 = vpack.c.b16 %v1053, %v1052
    %v1225 = vpack.c.b16 %v1055, %v1054
    %v1226 = vpack.c.b16 %v1057, %v1056
    %v1227 = vpack.c.b16 %v1059, %v1058
    %v1228 = vpack.c.b16 %v1061, %v1060
    %v1229 = vpack.c.b16 %v1063, %v1062
    %v1230 = vpack.c.b16 %v1065, %v1064
    %v1231 = vpack.c.b16 %v1067, %v1066
    %v1232 = vpack.c.b16 %v1069, %v1068
    %v1233 = vpack.c.b16 %v1071, %v1070
    %v1234 = vpack.c.b16 %v1073, %v1072
    %v1235 = vpack.c.b16 %v1075, %v1074
    %v1236 = vpack.c.b16 %v1077, %v1076
    %v1237 = vpack.c.b16 %v1079, %v1078
    %v1238 = vpack.c.b16 %v1081, %v1080
    %v1239 = vpack.c.b16 %v1083, %v1082
    %v1240 = vpack.c.b16 %v1085, %v1084
    %v1241 = vpack.c.b16 %v1087, %v1086
    %v1242 = vpack.c.b16 %v1089, %v1088
    %v1243 = vpack.c.b16 %v1091, %v1090
    %v1244 = vpack.c.b16 %v1093, %v1092
    %v1245 = vpack.c.b16 %v1095, %v1094
    %v1246 = vpack.c.b16 %v1097, %v1096
    %v1247 = vpack.c.b16 %v1099, %v1098
    %v1248 = vpack.c.b16 %v1101, %v1100
    %v1249 = vpack.c.b16 %v1103, %v1102
    %v1250 = vpack.c.b16 %v1105, %v1104
    %v1251 = vpack.c.b16 %v1107, %v1106
    %v1252 = vpack.c.b16 %v1109, %v1108
    %v1253 = vpack.c.b16 %v1111, %v1110
    %v1254 = vpack.c.b16 %v1113, %v1112
    %v1255 = vpack.c.b16 %v1115, %v1114
    %v1256 = vpack.c.b16 %v1117, %v1116
    %v1257 = vpack.c.b16 %v1119, %v1118
    %v1258 = vpack.c.b16 %v1121, %v1120
    %v1259 = vpack.c.b16 %v1123, %v1122
    %v1260 = vpack.c.b16 %v1125, %v1124
    %v1261 = vpack.c.b16 %v1127, %v1126
    %v1262 = vpack.c.b16 %v1129, %v1128
    %v1263 = vpack.c.b16 %v1131, %v1130
    %v1264 = vpack.c.b16 %v1133, %v1132
    %v1265 = vpack.c.b16 %v1135, %v1134
    %v1266 = vpack.c.b16 %v1137, %v1136
    %v1267 = vpack.c.b16 %v1139, %v1138
    %1396 = vmatprep.subr.bf16.mxu0 0
    %1397 = vmatpush1.bf16.msra.mxu0 %v1140
    %1398 = vmatprep.subr.bf16.mxu0 0
    %1399 = vmatpush1.bf16.msra.mxu0 %v1141
    %1400 = vmatprep.subr.bf16.mxu0 0
    %1401 = vmatpush1.bf16.msra.mxu0 %v1142
    %1402 = vmatprep.subr.bf16.mxu0 0
    %1403 = vmatpush1.bf16.msra.mxu0 %v1143
    %1404 = vmatprep.subr.bf16.mxu0 0
    %1405 = vmatpush1.bf16.msra.mxu0 %v1144
    %1406 = vmatprep.subr.bf16.mxu0 0
    %1407 = vmatpush1.bf16.msra.mxu0 %v1145
    %1408 = vmatprep.subr.bf16.mxu0 0
    %1409 = vmatpush1.bf16.msra.mxu0 %v1146
    %1410 = vmatprep.subr.bf16.mxu0 0
    %1411 = vmatpush1.bf16.msra.mxu0 %v1147
    %1412 = vmatprep.subr.bf16.mxu0 0
    %1413 = vmatpush1.bf16.msra.mxu0 %v1148
    %1414 = vmatprep.subr.bf16.mxu0 0
    %1415 = vmatpush1.bf16.msra.mxu0 %v1149
    %1416 = vmatprep.subr.bf16.mxu0 0
    %1417 = vmatpush1.bf16.msra.mxu0 %v1150
    %1418 = vmatprep.subr.bf16.mxu0 0
    %1419 = vmatpush1.bf16.msra.mxu0 %v1151
    %1420 = vmatprep.subr.bf16.mxu0 0
    %1421 = vmatpush1.bf16.msra.mxu0 %v1152
    %1422 = vmatprep.subr.bf16.mxu0 0
    %1423 = vmatpush1.bf16.msra.mxu0 %v1153
    %1424 = vmatprep.subr.bf16.mxu0 0
    %1425 = vmatpush1.bf16.msra.mxu0 %v1154
    %1426 = vmatprep.subr.bf16.mxu0 0
    %1427 = vmatpush1.bf16.msra.mxu0 %v1155
    %1428 = vmatprep.mubr.bf16.mxu0 %v350
    %1429 = vmatmul.mubr.bf16.gmra.mrb[0].mxu0 %v349
    %v1430 = vpop.f32.mrb[0].mxu0
    %v1431 = vadd.f32 %v626, %v1430
    %v1432 = vpop.f32.mrb[0].mxu0
    %v1433 = vpop.f32.mrb[0].mxu0
    %v1434 = vpop.f32.mrb[0].mxu0
    %1435 = vdwg.mxu0
    %1436 = vmatprep.subr.bf16.mxu0 0
    %1437 = vmatpush1.bf16.msra.mxu0 %v1156
    %1438 = vmatprep.subr.bf16.mxu0 0
    %1439 = vmatpush1.bf16.msra.mxu0 %v1157
    %1440 = vmatprep.subr.bf16.mxu0 0
    %1441 = vmatpush1.bf16.msra.mxu0 %v1158
    %1442 = vmatprep.subr.bf16.mxu0 0
    %1443 = vmatpush1.bf16.msra.mxu0 %v1159
    %1444 = vmatprep.subr.bf16.mxu0 0
    %1445 = vmatpush1.bf16.msra.mxu0 %v1160
    %1446 = vmatprep.subr.bf16.mxu0 0
    %1447 = vmatpush1.bf16.msra.mxu0 %v1161
    %1448 = vmatprep.subr.bf16.mxu0 0
    %1449 = vmatpush1.bf16.msra.mxu0 %v1162
    %1450 = vmatprep.subr.bf16.mxu0 0
    %1451 = vmatpush1.bf16.msra.mxu0 %v1163
    %1452 = vmatprep.subr.bf16.mxu0 0
    %1453 = vmatpush1.bf16.msra.mxu0 %v1164
    %1454 = vmatprep.subr.bf16.mxu0 0
    %1455 = vmatpush1.bf16.msra.mxu0 %v1165
    %1456 = vmatprep.subr.bf16.mxu0 0
    %1457 = vmatpush1.bf16.msra.mxu0 %v1166
    %1458 = vmatprep.subr.bf16.mxu0 0
    %1459 = vmatpush1.bf16.msra.mxu0 %v1167
    %1460 = vmatprep.subr.bf16.mxu0 0
    %1461 = vmatpush1.bf16.msra.mxu0 %v1168
    %1462 = vmatprep.subr.bf16.mxu0 0
    %1463 = vmatpush1.bf16.msra.mxu0 %v1169
    %1464 = vmatprep.subr.bf16.mxu0 0
    %1465 = vmatpush1.bf16.msra.mxu0 %v1170
    %1466 = vmatprep.subr.bf16.mxu0 0
    %1467 = vmatpush1.bf16.msra.mxu0 %v1171
    %1468 = vmatprep.mubr.bf16.mxu0 %v352
    %1469 = vmatmul.mubr.bf16.gmra.mrb[0].mxu0 %v351
    %v1470 = vpop.f32.mrb[0].mxu0
    %v1471 = vadd.f32 %v1431, %v1470
    %v1472 = vpop.f32.mrb[0].mxu0
    %v1473 = vpop.f32.mrb[0].mxu0
    %v1474 = vpop.f32.mrb[0].mxu0
    %1475 = vdwg.mxu0
    %1476 = vmatprep.subr.bf16.mxu0 0
    %1477 = vmatpush1.bf16.msra.mxu0 %v1172
    %1478 = vmatprep.subr.bf16.mxu0 0
    %1479 = vmatpush1.bf16.msra.mxu0 %v1173
    %1480 = vmatprep.subr.bf16.mxu0 0
    %1481 = vmatpush1.bf16.msra.mxu0 %v1174
    %1482 = vmatprep.subr.bf16.mxu0 0
    %1483 = vmatpush1.bf16.msra.mxu0 %v1175
    %1484 = vmatprep.subr.bf16.mxu0 0
    %1485 = vmatpush1.bf16.msra.mxu0 %v1176
    %1486 = vmatprep.subr.bf16.mxu0 0
    %1487 = vmatpush1.bf16.msra.mxu0 %v1177
    %1488 = vmatprep.subr.bf16.mxu0 0
    %1489 = vmatpush1.bf16.msra.mxu0 %v1178
    %1490 = vmatprep.subr.bf16.mxu0 0
    %1491 = vmatpush1.bf16.msra.mxu0 %v1179
    %1492 = vmatprep.subr.bf16.mxu0 0
    %1493 = vmatpush1.bf16.msra.mxu0 %v1180
    %1494 = vmatprep.subr.bf16.mxu0 0
    %1495 = vmatpush1.bf16.msra.mxu0 %v1181
    %1496 = vmatprep.subr.bf16.mxu0 0
    %1497 = vmatpush1.bf16.msra.mxu0 %v1182
    %1498 = vmatprep.subr.bf16.mxu0 0
    %1499 = vmatpush1.bf16.msra.mxu0 %v1183
    %1500 = vmatprep.subr.bf16.mxu0 0
    %1501 = vmatpush1.bf16.msra.mxu0 %v1184
    %1502 = vmatprep.subr.bf16.mxu0 0
    %1503 = vmatpush1.bf16.msra.mxu0 %v1185
    %1504 = vmatprep.subr.bf16.mxu0 0
    %1505 = vmatpush1.bf16.msra.mxu0 %v1186
    %1506 = vmatprep.subr.bf16.mxu0 0
    %1507 = vmatpush1.bf16.msra.mxu0 %v1187
    %1508 = vmatprep.mubr.bf16.mxu0 %v354
    %1509 = vmatmul.mubr.bf16.gmra.mrb[0].mxu0 %v353
    %v1510 = vpop.f32.mrb[0].mxu0
    %v1511 = vadd.f32 %v1471, %v1510
    %v1512 = vpop.f32.mrb[0].mxu0
    %v1513 = vpop.f32.mrb[0].mxu0
    %v1514 = vpop.f32.mrb[0].mxu0
    %1515 = vdwg.mxu0
    %1516 = vmatprep.subr.bf16.mxu0 0
    %1517 = vmatpush1.bf16.msra.mxu0 %v1188
    %1518 = vmatprep.subr.bf16.mxu0 0
    %1519 = vmatpush1.bf16.msra.mxu0 %v1189
    %1520 = vmatprep.subr.bf16.mxu0 0
    %1521 = vmatpush1.bf16.msra.mxu0 %v1190
    %1522 = vmatprep.subr.bf16.mxu0 0
    %1523 = vmatpush1.bf16.msra.mxu0 %v1191
    %1524 = vmatprep.subr.bf16.mxu0 0
    %1525 = vmatpush1.bf16.msra.mxu0 %v1192
    %1526 = vmatprep.subr.bf16.mxu0 0
    %1527 = vmatpush1.bf16.msra.mxu0 %v1193
    %1528 = vmatprep.subr.bf16.mxu0 0
    %1529 = vmatpush1.bf16.msra.mxu0 %v1194
    %1530 = vmatprep.subr.bf16.mxu0 0
    %1531 = vmatpush1.bf16.msra.mxu0 %v1195
    %1532 = vmatprep.subr.bf16.mxu0 0
    %1533 = vmatpush1.bf16.msra.mxu0 %v1196
    %1534 = vmatprep.subr.bf16.mxu0 0
    %1535 = vmatpush1.bf16.msra.mxu0 %v1197
    %1536 = vmatprep.subr.bf16.mxu0 0
    %1537 = vmatpush1.bf16.msra.mxu0 %v1198
    %1538 = vmatprep.subr.bf16.mxu0 0
    %1539 = vmatpush1.bf16.msra.mxu0 %v1199
    %1540 = vmatprep.subr.bf16.mxu0 0
    %1541 = vmatpush1.bf16.msra.mxu0 %v1200
    %1542 = vmatprep.subr.bf16.mxu0 0
    %1543 = vmatpush1.bf16.msra.mxu0 %v1201
    %1544 = vmatprep.subr.bf16.mxu0 0
    %1545 = vmatpush1.bf16.msra.mxu0 %v1202
    %1546 = vmatprep.subr.bf16.mxu0 0
    %1547 = vmatpush1.bf16.msra.mxu0 %v1203
    %1548 = vmatprep.mubr.bf16.mxu0 %v356
    %1549 = vmatmul.mubr.bf16.gmra.mrb[0].mxu0 %v355
    %v1550 = vpop.f32.mrb[0].mxu0
    %v1551 = vadd.f32 %v1511, %v1550
    %v1552 = vpop.f32.mrb[0].mxu0
    %v1553 = vpop.f32.mrb[0].mxu0
    %v1554 = vpop.f32.mrb[0].mxu0
    %1555 = vdwg.mxu0
    %1556 = vmatprep.subr.bf16.mxu0 0
    %1557 = vmatpush1.bf16.msra.mxu0 %v1204
    %1558 = vmatprep.subr.bf16.mxu0 0
    %1559 = vmatpush1.bf16.msra.mxu0 %v1205
    %1560 = vmatprep.subr.bf16.mxu0 0
    %1561 = vmatpush1.bf16.msra.mxu0 %v1206
    %1562 = vmatprep.subr.bf16.mxu0 0
    %1563 = vmatpush1.bf16.msra.mxu0 %v1207
    %1564 = vmatprep.subr.bf16.mxu0 0
    %1565 = vmatpush1.bf16.msra.mxu0 %v1208
    %1566 = vmatprep.subr.bf16.mxu0 0
    %1567 = vmatpush1.bf16.msra.mxu0 %v1209
    %1568 = vmatprep.subr.bf16.mxu0 0
    %1569 = vmatpush1.bf16.msra.mxu0 %v1210
    %1570 = vmatprep.subr.bf16.mxu0 0
    %1571 = vmatpush1.bf16.msra.mxu0 %v1211
    %1572 = vmatprep.subr.bf16.mxu0 0
    %1573 = vmatpush1.bf16.msra.mxu0 %v1212
    %1574 = vmatprep.subr.bf16.mxu0 0
    %1575 = vmatpush1.bf16.msra.mxu0 %v1213
    %1576 = vmatprep.subr.bf16.mxu0 0
    %1577 = vmatpush1.bf16.msra.mxu0 %v1214
    %1578 = vmatprep.subr.bf16.mxu0 0
    %1579 = vmatpush1.bf16.msra.mxu0 %v1215
    %1580 = vmatprep.subr.bf16.mxu0 0
    %1581 = vmatpush1.bf16.msra.mxu0 %v1216
    %1582 = vmatprep.subr.bf16.mxu0 0
    %1583 = vmatpush1.bf16.msra.mxu0 %v1217
    %1584 = vmatprep.subr.bf16.mxu0 0
    %1585 = vmatpush1.bf16.msra.mxu0 %v1218
    %1586 = vmatprep.subr.bf16.mxu0 0
    %1587 = vmatpush1.bf16.msra.mxu0 %v1219
    %1588 = vmatprep.mubr.bf16.mxu0 %v358
    %1589 = vmatmul.mubr.bf16.gmra.mrb[0].mxu0 %v357
    %v1590 = vpop.f32.mrb[0].mxu0
    %v1591 = vadd.f32 %v1551, %v1590
    %v1592 = vpop.f32.mrb[0].mxu0
    %v1593 = vpop.f32.mrb[0].mxu0
    %v1594 = vpop.f32.mrb[0].mxu0
    %1595 = vdwg.mxu0
    %1596 = vmatprep.subr.bf16.mxu0 0
    %1597 = vmatpush1.bf16.msra.mxu0 %v1220
    %1598 = vmatprep.subr.bf16.mxu0 0
    %1599 = vmatpush1.bf16.msra.mxu0 %v1221
    %1600 = vmatprep.subr.bf16.mxu0 0
    %1601 = vmatpush1.bf16.msra.mxu0 %v1222
    %1602 = vmatprep.subr.bf16.mxu0 0
    %1603 = vmatpush1.bf16.msra.mxu0 %v1223
    %1604 = vmatprep.subr.bf16.mxu0 0
    %1605 = vmatpush1.bf16.msra.mxu0 %v1224
    %1606 = vmatprep.subr.bf16.mxu0 0
    %1607 = vmatpush1.bf16.msra.mxu0 %v1225
    %1608 = vmatprep.subr.bf16.mxu0 0
    %1609 = vmatpush1.bf16.msra.mxu0 %v1226
    %1610 = vmatprep.subr.bf16.mxu0 0
    %1611 = vmatpush1.bf16.msra.mxu0 %v1227
    %1612 = vmatprep.subr.bf16.mxu0 0
    %1613 = vmatpush1.bf16.msra.mxu0 %v1228
    %1614 = vmatprep.subr.bf16.mxu0 0
    %1615 = vmatpush1.bf16.msra.mxu0 %v1229
    %1616 = vmatprep.subr.bf16.mxu0 0
    %1617 = vmatpush1.bf16.msra.mxu0 %v1230
    %1618 = vmatprep.subr.bf16.mxu0 0
    %1619 = vmatpush1.bf16.msra.mxu0 %v1231
    %1620 = vmatprep.subr.bf16.mxu0 0
    %1621 = vmatpush1.bf16.msra.mxu0 %v1232
    %1622 = vmatprep.subr.bf16.mxu0 0
    %1623 = vmatpush1.bf16.msra.mxu0 %v1233
    %1624 = vmatprep.subr.bf16.mxu0 0
    %1625 = vmatpush1.bf16.msra.mxu0 %v1234
    %1626 = vmatprep.subr.bf16.mxu0 0
    %1627 = vmatpush1.bf16.msra.mxu0 %v1235
    %1628 = vmatprep.mubr.bf16.mxu0 %v360
    %1629 = vmatmul.mubr.bf16.gmra.mrb[0].mxu0 %v359
    %v1630 = vpop.f32.mrb[0].mxu0
    %v1631 = vadd.f32 %v1591, %v1630
    %v1632 = vpop.f32.mrb[0].mxu0
    %v1633 = vpop.f32.mrb[0].mxu0
    %v1634 = vpop.f32.mrb[0].mxu0
    %1635 = vdwg.mxu0
    %1636 = vmatprep.subr.bf16.mxu0 0
    %1637 = vmatpush1.bf16.msra.mxu0 %v1236
    %1638 = vmatprep.subr.bf16.mxu0 0
    %1639 = vmatpush1.bf16.msra.mxu0 %v1237
    %1640 = vmatprep.subr.bf16.mxu0 0
    %1641 = vmatpush1.bf16.msra.mxu0 %v1238
    %1642 = vmatprep.subr.bf16.mxu0 0
    %1643 = vmatpush1.bf16.msra.mxu0 %v1239
    %1644 = vmatprep.subr.bf16.mxu0 0
    %1645 = vmatpush1.bf16.msra.mxu0 %v1240
    %1646 = vmatprep.subr.bf16.mxu0 0
    %1647 = vmatpush1.bf16.msra.mxu0 %v1241
    %1648 = vmatprep.subr.bf16.mxu0 0
    %1649 = vmatpush1.bf16.msra.mxu0 %v1242
    %1650 = vmatprep.subr.bf16.mxu0 0
    %1651 = vmatpush1.bf16.msra.mxu0 %v1243
    %1652 = vmatprep.subr.bf16.mxu0 0
    %1653 = vmatpush1.bf16.msra.mxu0 %v1244
    %1654 = vmatprep.subr.bf16.mxu0 0
    %1655 = vmatpush1.bf16.msra.mxu0 %v1245
    %1656 = vmatprep.subr.bf16.mxu0 0
    %1657 = vmatpush1.bf16.msra.mxu0 %v1246
    %1658 = vmatprep.subr.bf16.mxu0 0
    %1659 = vmatpush1.bf16.msra.mxu0 %v1247
    %1660 = vmatprep.subr.bf16.mxu0 0
    %1661 = vmatpush1.bf16.msra.mxu0 %v1248
    %1662 = vmatprep.subr.bf16.mxu0 0
    %1663 = vmatpush1.bf16.msra.mxu0 %v1249
    %1664 = vmatprep.subr.bf16.mxu0 0
    %1665 = vmatpush1.bf16.msra.mxu0 %v1250
    %1666 = vmatprep.subr.bf16.mxu0 0
    %1667 = vmatpush1.bf16.msra.mxu0 %v1251
    %1668 = vmatprep.mubr.bf16.mxu0 %v362
    %1669 = vmatmul.mubr.bf16.gmra.mrb[0].mxu0 %v361
    %v1670 = vpop.f32.mrb[0].mxu0
    %v1671 = vadd.f32 %v1631, %v1670
    %v1672 = vpop.f32.mrb[0].mxu0
    %v1673 = vpop.f32.mrb[0].mxu0
    %v1674 = vpop.f32.mrb[0].mxu0
    %1675 = vdwg.mxu0
    %1676 = vmatprep.subr.bf16.mxu0 0
    %1677 = vmatpush1.bf16.msra.mxu0 %v1252
    %1678 = vmatprep.subr.bf16.mxu0 0
    %1679 = vmatpush1.bf16.msra.mxu0 %v1253
    %1680 = vmatprep.subr.bf16.mxu0 0
    %1681 = vmatpush1.bf16.msra.mxu0 %v1254
    %1682 = vmatprep.subr.bf16.mxu0 0
    %1683 = vmatpush1.bf16.msra.mxu0 %v1255
    %1684 = vmatprep.subr.bf16.mxu0 0
    %1685 = vmatpush1.bf16.msra.mxu0 %v1256
    %1686 = vmatprep.subr.bf16.mxu0 0
    %1687 = vmatpush1.bf16.msra.mxu0 %v1257
    %1688 = vmatprep.subr.bf16.mxu0 0
    %1689 = vmatpush1.bf16.msra.mxu0 %v1258
    %1690 = vmatprep.subr.bf16.mxu0 0
    %1691 = vmatpush1.bf16.msra.mxu0 %v1259
    %1692 = vmatprep.subr.bf16.mxu0 0
    %1693 = vmatpush1.bf16.msra.mxu0 %v1260
    %1694 = vmatprep.subr.bf16.mxu0 0
    %1695 = vmatpush1.bf16.msra.mxu0 %v1261
    %1696 = vmatprep.subr.bf16.mxu0 0
    %1697 = vmatpush1.bf16.msra.mxu0 %v1262
    %1698 = vmatprep.subr.bf16.mxu0 0
    %1699 = vmatpush1.bf16.msra.mxu0 %v1263
    %1700 = vmatprep.subr.bf16.mxu0 0
    %1701 = vmatpush1.bf16.msra.mxu0 %v1264
    %1702 = vmatprep.subr.bf16.mxu0 0
    %1703 = vmatpush1.bf16.msra.mxu0 %v1265
    %1704 = vmatprep.subr.bf16.mxu0 0
    %1705 = vmatpush1.bf16.msra.mxu0 %v1266
    %1706 = vmatprep.subr.bf16.mxu0 0
    %1707 = vmatpush1.bf16.msra.mxu0 %v1267
    %1708 = vmatprep.mubr.bf16.mxu0 %v364
    %1709 = vmatmul.mubr.bf16.gmra.mrb[0].mxu0 %v363
    %v1710 = vpop.f32.mrb[0].mxu0
    %v1711 = vadd.f32 %v1671, %v1710
    %v1712 = vpop.f32.mrb[0].mxu0
    %v1713 = vpop.f32.mrb[0].mxu0
    %v1714 = vpop.f32.mrb[0].mxu0
    %1715 = vdwg.mxu0
    %1716 = vst [vmem:[#allocation4] sm:$0xff] %v1711
    // Predicated region
    $region18: #{classifier_apply.1} parent=1 // pred_check
      _
    $region19: #{classifier_apply.1} parent=1 // pred_check_branch
      %1718 = sbr.rel (0) target = $region21
    $region20: #{classifier_apply.1} parent=1 // pred_region
      // Predicated region
      $region22: #{classifier_apply.1} parent=20 // pred_check
        _
      $region23: #{classifier_apply.1} parent=20 // pred_check_branch
        %1720 = sbr.rel (0) target = $region25
      $region24: #{classifier_apply.1} parent=20 // pred_region
        // Predicated region
        $region26: #{classifier_apply.1} parent=24 // pred_check
          _
        $region27: #{classifier_apply.1} parent=24 // pred_check_branch
          %1722 = sbr.rel target = $region29
        $region28: #{classifier_apply.1} parent=24 // pred_region
          // Predicated region
          $region41: #{classifier_apply.1} parent=28 // pred_check
            _
          $region42: #{classifier_apply.1} parent=28 // pred_check_branch
            %1737 = sbr.rel (0) target = $region44
          $region43: #{classifier_apply.1} parent=28 // pred_region
            loop: start=0, step=1, limit=1
            $region45: #{classifier_apply.1} parent=43 // loop_pre_header
              _
            $region46: #{classifier_apply.1} parent=43 // loop_header
              %s1740 = sphi 0, %s1744
              %p1741 = scmp.ge.s32.totalorder %s1740, 1
              %s1745 = sphi [#allocation4], [#allocation4]
              %s1746 = sphi %s3, %s3
            $region47: #{classifier_apply.1} parent=43 // loop_header_branch
              %1743 = sbr.rel (%p1741) target = $region51
            $region48: #{classifier_apply.1} parent=43 // loop_body
              %v1747 = vld [vmem:[%s1745] sm:$0x1]
              %1748 = vst [vmem:[%s1746] sm:$0x1] %v1747
            $region49: #{classifier_apply.1} parent=43 // loop_footer
              %s1744 = sadd.s32 1, %s1740
            $region50: #{classifier_apply.1} parent=43 // loop_footer_branch
              %1739 = sbr.rel target = $region46
            $region51: #{classifier_apply.1} parent=43 // loop_exit
              _
          $region44: #{classifier_apply.1} parent=28 // pred_fallthru
            _
        $region29: #{classifier_apply.1} parent=24 // pred_fallthru
          _
        // Predicated region
        $region30: #{classifier_apply.1} parent=24 // pred_check
          _
        $region31: #{classifier_apply.1} parent=24 // pred_check_branch
          %1724 = sbr.rel (0) target = $region33
        $region32: #{classifier_apply.1} parent=24 // pred_region
          loop: start=0, step=1, limit=1
          $region34: #{classifier_apply.1} parent=32 // loop_pre_header
            _
          $region35: #{classifier_apply.1} parent=32 // loop_header
            %s1727 = sphi 0, %s1731
            %p1728 = scmp.ge.s32.totalorder %s1727, 1
            %s1732 = sphi [#allocation4], [#allocation4]
            %s1733 = sphi %s3, %s3
          $region36: #{classifier_apply.1} parent=32 // loop_header_branch
            %1730 = sbr.rel (%p1728) target = $region40
          $region37: #{classifier_apply.1} parent=32 // loop_body
            %v1734 = vld [vmem:[%s1732] sm:$0x1]
            %1735 = vst [vmem:[%s1733] sm:$0x1] %v1734
          $region38: #{classifier_apply.1} parent=32 // loop_footer
            %s1731 = sadd.s32 1, %s1727
          $region39: #{classifier_apply.1} parent=32 // loop_footer_branch
            %1726 = sbr.rel target = $region35
          $region40: #{classifier_apply.1} parent=32 // loop_exit
            _
        $region33: #{classifier_apply.1} parent=24 // pred_fallthru
          _
      $region25: #{classifier_apply.1} parent=20 // pred_fallthru
        _
      %1749 = vnop
    $region21: #{classifier_apply.1} parent=1 // pred_fallthru
      _
    // Predicated region
    $region52: #{classifier_apply.1} parent=1 // pred_check
      _
    $region53: #{classifier_apply.1} parent=1 // pred_check_branch
      %1751 = sbr.rel (0) target = $region55
    $region54: #{classifier_apply.1} parent=1 // pred_region
      _
    $region55: #{classifier_apply.1} parent=1 // pred_fallthru
      _
    %1752 = vsyncpa [#allocation3], 1

</llo_original>
